<compile_context>
chip_gen: v7x
topology: tpu7x:2x2x1
jax: 0.10.0
libtpu: 0.0.40
codegen_flags: <defaults>
</compile_context>

<pallas_src>
import functools

import jax
import jax.numpy as jnp
from jax.experimental import pallas as pl
from jax.experimental.pallas import tpu as pltpu

PADDING_VALUE = -123.0
MAX_SEQ_LENGTH = 124


def _heat_kernel(params_ref, mask_ref, t_ref, x_ref, o_ref, *,
                 bt, s, s_out, d, padding_value):
    """One grid step processes `bt` timelines.

    params_ref: SMEM (2,)              -> [epsilon, beta] (learnable scalars)
    mask_ref  : VMEM (s, s) bf16       -> causal mask, grid-invariant
    t_ref     : VMEM (bt, s, 1) f32    -> timestamps, column layout
    x_ref     : VMEM (bt, s, d)        -> hidden states
    o_ref     : VMEM (bt, s_out, d)    -> HEAT output, padded to s_out rows
    """
    eps = params_ref[0]
    beta = params_ref[1]

    mask = mask_ref[...]                                   # (s, s) bf16, hoisted

    if s_out > s:                                          # static: pad rows >= s
        pad_block = jnp.full((s_out - s, d), padding_value, o_ref.dtype)

    for b in range(bt):                                    # static unroll, bt is small
        x = x_ref[b].astype(jnp.float32)                   # (s, d)
        tc = t_ref[b]                                      # (s, 1)
        tcc = tc - tc[0:1, :]                              # centre at t0 (range safety)
        decay_j = jnp.exp(-beta * tcc)                     # (s, 1), <= 1
        grow_i = eps * jnp.exp(beta * tcc)                 # (s, 1)

        rx = jnp.maximum(x, 0.0)
        # Fused RHS: [x | exp(-beta*(t_j-t0)) * relu(x)]  -> one (s,s)@(s,2d) matmul.
        rhs = jnp.concatenate(
            [x.astype(jnp.bfloat16), (rx * decay_j).astype(jnp.bfloat16)], axis=-1)
        res = jnp.dot(mask, rhs, preferred_element_type=jnp.float32)   # (s, 2d) f32

        # out[i] = sum_{j<=i} x[j] + eps*exp(beta*(t_i-t0)) * sum_{j<=i} e^{-beta*(t_j-t0)} relu(x[j])
        out = res[:, :d] + grow_i * res[:, d:]
        o_ref[b, :s, :] = out.astype(o_ref.dtype)
        if s_out > s:
            o_ref[b, s:, :] = pad_block


def _pick_batch_tile(B, S, D, s_out, vmem_budget_bytes=12 << 20):
    """Largest batch tile that (a) divides B, (b) fits a conservative VMEM budget
    (safe for v5e's 16 MiB scoped default and v7x's 64 MiB physical VMEM), and
    (c) leaves >= 2 grid steps for megacore / dual-TensorCore sharding when B allows."""
    per_timeline = (2 * S * D * 4          # h block, double-buffered
                    + 2 * s_out * D * 4    # out block, double-buffered
                    + S * 2 * D * 2        # bf16 fused RHS temporary
                    + S * 2 * D * 4)       # f32 matmul result temporary
    for bt in range(min(B, 16), 0, -1):
        if B % bt:
            continue
        if bt * per_timeline > vmem_budget_bytes:
            continue
        if bt > 1 and B // bt < 2:
            continue
        return bt
    return 1


def heat_layer_forward(h, t, epsilon=0.01, beta=0.001,
                       max_seq_length=MAX_SEQ_LENGTH,
                       padding_value=PADDING_VALUE):
    """Pallas implementation of HeatLayer.forward.

    h: (B, S, D) hidden states
    t: (B, S)    timestamps (strictly increasing per timeline, epoch days)
    returns: (B, max_seq_length, D) f32 if B > 1 (rows >= S filled with padding_value),
             else (1, S, D) f32 (the reference pads only when batch_size > 1).
    """
    B, S, D = h.shape
    # Reference pads only when batch_size > 1; guard against S > max_seq_length.
    s_out = max(S, max_seq_length) if B > 1 else S

    bt = _pick_batch_tile(B, S, D, s_out)
    grid = (B // bt,)

    params = jnp.asarray([epsilon, beta], dtype=jnp.float32)     # learnable priors
    t_col = t.astype(jnp.float32).reshape(B, S, 1)               # tiny (B*S) reshape
    row = jnp.arange(S, dtype=jnp.int32)[:, None]
    col = jnp.arange(S, dtype=jnp.int32)[None, :]
    mask = (col <= row).astype(jnp.bfloat16)                     # causal, exact in bf16

    kernel = functools.partial(_heat_kernel, bt=bt, s=S, s_out=s_out, d=D,
                               padding_value=padding_value)

    return pl.pallas_call(
        kernel,
        out_shape=jax.ShapeDtypeStruct((B, s_out, D), jnp.float32),
        grid=grid,
        in_specs=[
            pl.BlockSpec(memory_space=pltpu.MemorySpace.SMEM),    # [eps, beta]
            pl.BlockSpec((S, S), lambda i: (0, 0)),               # causal mask (invariant)
            pl.BlockSpec((bt, S, 1), lambda i: (i, 0, 0)),        # timestamps (column)
            pl.BlockSpec((bt, S, D), lambda i: (i, 0, 0)),        # hidden states
        ],
        out_specs=pl.BlockSpec((bt, s_out, D), lambda i: (i, 0, 0)),
        compiler_params=pltpu.CompilerParams(
            dimension_semantics=("parallel",)),
    )(params, mask, t_col, h)


def heat_reference(h, t, epsilon, beta):
    """Pure-JAX reference mirroring the PyTorch per-post loop (f32)."""
    B, S, D = h.shape
    outs = []
    for b in range(B):
        rows = []
        for i in range(S):
            hist = h[b, : i + 1]                              # x[:n_historical]
            deltas = t[b, i] - t[b, : i + 1]                  # non-negative
            decay = (epsilon * jnp.exp(beta * deltas))[:, None]
            hawkes = hist + jnp.maximum(hist, 0.0) * decay
            rows.append(jnp.sum(hawkes, axis=0))
        outs.append(jnp.stack(rows))
    return jnp.stack(outs)


if __name__ == "__main__":
    key = jax.random.PRNGKey(0)
    kh, kt = jax.random.split(key)

    B, S, D = 4, 8, 128          # small demo shapes; module default D=768 also works
    h = jax.random.normal(kh, (B, S, D), dtype=jnp.float32)
    # strictly increasing timestamps (epoch time in days)
    dt = jax.random.uniform(kt, (B, S), minval=0.5, maxval=3.0, dtype=jnp.float32)
    t = jnp.cumsum(dt, axis=1)

    out = jax.block_until_ready(heat_layer_forward(h, t, epsilon=0.01, beta=0.001))
    ref = heat_reference(h, t, 0.01, 0.001)

    assert out.shape == (B, MAX_SEQ_LENGTH, D)
    # bf16 matmul operands with f32 accumulation -> ~3 significant decimal digits.
    assert jnp.allclose(out[:, :S, :], ref, atol=5e-2, rtol=5e-2)
    assert jnp.all(out[:, S:, :] == PADDING_VALUE)

    # batch_size == 1 path: the reference does not pad.
    out1 = jax.block_until_ready(heat_layer_forward(h[:1], t[:1]))
    assert out1.shape == (1, S, D)
    assert jnp.allclose(out1, ref[:1], atol=5e-2, rtol=5e-2)

    print("KERNEL_OK")
</pallas_src>

<mosaic_0001>
module attributes {stable_mosaic.version = 11 : i64} {
  func.func @_heat_kernel(%arg0: i32, %arg1: memref<2xf32, #tpu.memory_space<smem>>, %arg2: memref<8x8xbf16, #tpu.memory_space<vmem>>, %arg3: memref<2x8x1xf32, #tpu.memory_space<vmem>>, %arg4: memref<2x8x128xf32, #tpu.memory_space<vmem>>, %arg5: memref<2x124x128xf32, #tpu.memory_space<vmem>>) attributes {dimension_semantics = [#tpu.dimension_semantics<parallel>], iteration_bounds = array<i64: 2>, scalar_prefetch = 0 : i64, scratch_operands = 0 : i64, tpu.core_type = #tpu.core_type<tc>, window_params = [{transform_indices = @transform_0, window_bounds = array<i64: 2>}, {pipeline_mode = #tpu.pipeline_mode<synchronous>, transform_indices = @transform_1, window_bounds = array<i64: 8, 8>}, {transform_indices = @transform_2, window_bounds = array<i64: 2, 8, 1>}, {transform_indices = @transform_3, window_bounds = array<i64: 2, 8, 128>}, {transform_indices = @transform_4, window_bounds = array<i64: 2, 124, 128>}]} {
    %c0 = arith.constant 0 : index
    %0 = memref.load %arg1[%c0] : memref<2xf32, #tpu.memory_space<smem>>
    %c1 = arith.constant 1 : index
    %1 = memref.load %arg1[%c1] : memref<2xf32, #tpu.memory_space<smem>>
    %c0_0 = arith.constant 0 : index
    %c0_1 = arith.constant 0 : index
    %2 = vector.load %arg2[%c0_0, %c0_1] : memref<8x8xbf16, #tpu.memory_space<vmem>>, vector<8x8xbf16>
    %cst = arith.constant -1.230000e+02 : f32
    %3 = vector.broadcast %cst : f32 to vector<116x128xf32>
    %c0_2 = arith.constant 0 : index
    %c0_3 = arith.constant 0 : index
    %c0_4 = arith.constant 0 : index
    %4 = vector.load %arg4[%c0_2, %c0_3, %c0_4] : memref<2x8x128xf32, #tpu.memory_space<vmem>>, vector<1x8x128xf32>
    %5 = vector.shape_cast %4 : vector<1x8x128xf32> to vector<8x128xf32>
    %c0_5 = arith.constant 0 : index
    %c0_6 = arith.constant 0 : index
    %c0_7 = arith.constant 0 : index
    %6 = vector.load %arg3[%c0_5, %c0_6, %c0_7] : memref<2x8x1xf32, #tpu.memory_space<vmem>>, vector<1x8x1xf32>
    %7 = vector.shape_cast %6 : vector<1x8x1xf32> to vector<8x1xf32>
    %8 = vector.extract_strided_slice %7 {offsets = [0, 0], sizes = [1, 1], strides = [1, 1]} : vector<8x1xf32> to vector<1x1xf32>
    %9 = vector.broadcast %8 : vector<1x1xf32> to vector<8x1xf32>
    %10 = arith.subf %7, %9 : vector<8x1xf32>
    %cst_8 = arith.constant 0.000000e+00 : f32
    %11 = arith.subf %cst_8, %1 : f32
    %12 = vector.broadcast %11 : f32 to vector<8x1xf32>
    %13 = arith.mulf %12, %10 : vector<8x1xf32>
    %14 = math.exp %13 : vector<8x1xf32>
    %15 = vector.broadcast %1 : f32 to vector<8x1xf32>
    %16 = arith.mulf %15, %10 : vector<8x1xf32>
    %17 = math.exp %16 : vector<8x1xf32>
    %18 = vector.broadcast %0 : f32 to vector<8x1xf32>
    %19 = arith.mulf %18, %17 : vector<8x1xf32>
    %cst_9 = arith.constant 0.000000e+00 : f32
    %20 = vector.broadcast %cst_9 : f32 to vector<8x128xf32>
    %21 = arith.maximumf %5, %20 : vector<8x128xf32>
    %22 = arith.truncf %5 : vector<8x128xf32> to vector<8x128xbf16>
    %23 = vector.broadcast %14 : vector<8x1xf32> to vector<8x128xf32>
    %24 = arith.mulf %21, %23 : vector<8x128xf32>
    %25 = arith.truncf %24 : vector<8x128xf32> to vector<8x128xbf16>
    %26 = tpu.concatenate %22, %25 in 1 : vector<8x128xbf16>, vector<8x128xbf16> -> vector<8x256xbf16>
    %cst_10 = arith.constant dense<0.000000e+00> : vector<8x256xf32>
    %27 = tpu.matmul %2, %26, %cst_10 {dimension_numbers = #tpu.dot_dimension_numbers<[1], [0], [0], [1], [0, 0, 1, 1], [], []>} : vector<8x8xbf16>, vector<8x256xbf16>, vector<8x256xf32> -> vector<8x256xf32>
    %28 = vector.extract_strided_slice %27 {offsets = [0, 0], sizes = [8, 128], strides = [1, 1]} : vector<8x256xf32> to vector<8x128xf32>
    %29 = vector.extract_strided_slice %27 {offsets = [0, 128], sizes = [8, 128], strides = [1, 1]} : vector<8x256xf32> to vector<8x128xf32>
    %30 = vector.broadcast %19 : vector<8x1xf32> to vector<8x128xf32>
    %31 = arith.mulf %30, %29 : vector<8x128xf32>
    %32 = arith.addf %28, %31 : vector<8x128xf32>
    %c0_11 = arith.constant 0 : index
    %c0_12 = arith.constant 0 : index
    %c0_13 = arith.constant 0 : index
    %33 = vector.load %arg5[%c0_11, %c0_12, %c0_13] : memref<2x124x128xf32, #tpu.memory_space<vmem>>, vector<1x8x128xf32>
    %34 = vector.shape_cast %33 : vector<1x8x128xf32> to vector<8x128xf32>
    %35 = vector.shape_cast %32 : vector<8x128xf32> to vector<1x8x128xf32>
    tpu.vector_store %arg5[%c0_11, %c0_12, %c0_13], %35 {strides = array<i32>} : memref<2x124x128xf32, #tpu.memory_space<vmem>>, vector<1x8x128xf32>,
    %c0_14 = arith.constant 0 : index
    %c8 = arith.constant 8 : index
    %c0_15 = arith.constant 0 : index
    %36 = vector.load %arg5[%c0_14, %c8, %c0_15] : memref<2x124x128xf32, #tpu.memory_space<vmem>>, vector<1x116x128xf32>
    %37 = vector.shape_cast %36 : vector<1x116x128xf32> to vector<116x128xf32>
    %38 = vector.shape_cast %3 : vector<116x128xf32> to vector<1x116x128xf32>
    tpu.vector_store %arg5[%c0_14, %c8, %c0_15], %38 {strides = array<i32>} : memref<2x124x128xf32, #tpu.memory_space<vmem>>, vector<1x116x128xf32>,
    %c1_16 = arith.constant 1 : index
    %c0_17 = arith.constant 0 : index
    %c0_18 = arith.constant 0 : index
    %39 = vector.load %arg4[%c1_16, %c0_17, %c0_18] : memref<2x8x128xf32, #tpu.memory_space<vmem>>, vector<1x8x128xf32>
    %40 = vector.shape_cast %39 : vector<1x8x128xf32> to vector<8x128xf32>
    %c1_19 = arith.constant 1 : index
    %c0_20 = arith.constant 0 : index
    %c0_21 = arith.constant 0 : index
    %41 = vector.load %arg3[%c1_19, %c0_20, %c0_21] : memref<2x8x1xf32, #tpu.memory_space<vmem>>, vector<1x8x1xf32>
    %42 = vector.shape_cast %41 : vector<1x8x1xf32> to vector<8x1xf32>
    %43 = vector.extract_strided_slice %42 {offsets = [0, 0], sizes = [1, 1], strides = [1, 1]} : vector<8x1xf32> to vector<1x1xf32>
    %44 = vector.broadcast %43 : vector<1x1xf32> to vector<8x1xf32>
    %45 = arith.subf %42, %44 : vector<8x1xf32>
    %cst_22 = arith.constant 0.000000e+00 : f32
    %46 = arith.subf %cst_22, %1 : f32
    %47 = vector.broadcast %46 : f32 to vector<8x1xf32>
    %48 = arith.mulf %47, %45 : vector<8x1xf32>
    %49 = math.exp %48 : vector<8x1xf32>
    %50 = vector.broadcast %1 : f32 to vector<8x1xf32>
    %51 = arith.mulf %50, %45 : vector<8x1xf32>
    %52 = math.exp %51 : vector<8x1xf32>
    %53 = vector.broadcast %0 : f32 to vector<8x1xf32>
    %54 = arith.mulf %53, %52 : vector<8x1xf32>
    %cst_23 = arith.constant 0.000000e+00 : f32
    %55 = vector.broadcast %cst_23 : f32 to vector<8x128xf32>
    %56 = arith.maximumf %40, %55 : vector<8x128xf32>
    %57 = arith.truncf %40 : vector<8x128xf32> to vector<8x128xbf16>
    %58 = vector.broadcast %49 : vector<8x1xf32> to vector<8x128xf32>
    %59 = arith.mulf %56, %58 : vector<8x128xf32>
    %60 = arith.truncf %59 : vector<8x128xf32> to vector<8x128xbf16>
    %61 = tpu.concatenate %57, %60 in 1 : vector<8x128xbf16>, vector<8x128xbf16> -> vector<8x256xbf16>
    %cst_24 = arith.constant dense<0.000000e+00> : vector<8x256xf32>
    %62 = tpu.matmul %2, %61, %cst_24 {dimension_numbers = #tpu.dot_dimension_numbers<[1], [0], [0], [1], [0, 0, 1, 1], [], []>} : vector<8x8xbf16>, vector<8x256xbf16>, vector<8x256xf32> -> vector<8x256xf32>
    %63 = vector.extract_strided_slice %62 {offsets = [0, 0], sizes = [8, 128], strides = [1, 1]} : vector<8x256xf32> to vector<8x128xf32>
    %64 = vector.extract_strided_slice %62 {offsets = [0, 128], sizes = [8, 128], strides = [1, 1]} : vector<8x256xf32> to vector<8x128xf32>
    %65 = vector.broadcast %54 : vector<8x1xf32> to vector<8x128xf32>
    %66 = arith.mulf %65, %64 : vector<8x128xf32>
    %67 = arith.addf %63, %66 : vector<8x128xf32>
    %c1_25 = arith.constant 1 : index
    %c0_26 = arith.constant 0 : index
    %c0_27 = arith.constant 0 : index
    %68 = vector.load %arg5[%c1_25, %c0_26, %c0_27] : memref<2x124x128xf32, #tpu.memory_space<vmem>>, vector<1x8x128xf32>
    %69 = vector.shape_cast %68 : vector<1x8x128xf32> to vector<8x128xf32>
    %70 = vector.shape_cast %67 : vector<8x128xf32> to vector<1x8x128xf32>
    tpu.vector_store %arg5[%c1_25, %c0_26, %c0_27], %70 {strides = array<i32>} : memref<2x124x128xf32, #tpu.memory_space<vmem>>, vector<1x8x128xf32>,
    %c1_28 = arith.constant 1 : index
    %c8_29 = arith.constant 8 : index
    %c0_30 = arith.constant 0 : index
    %71 = vector.load %arg5[%c1_28, %c8_29, %c0_30] : memref<2x124x128xf32, #tpu.memory_space<vmem>>, vector<1x116x128xf32>
    %72 = vector.shape_cast %71 : vector<1x116x128xf32> to vector<116x128xf32>
    %73 = vector.shape_cast %3 : vector<116x128xf32> to vector<1x116x128xf32>
    tpu.vector_store %arg5[%c1_28, %c8_29, %c0_30], %73 {strides = array<i32>} : memref<2x124x128xf32, #tpu.memory_space<vmem>>, vector<1x116x128xf32>,
    return
  }
  func.func @transform_0(%arg0: i32) -> i32 {
    %c0_i32 = arith.constant 0 : i32
    %c0_i32_0 = arith.constant 0 : i32
    return %c0_i32 : i32
  }
  func.func @transform_1(%arg0: i32) -> (i32, i32) {
    %c0_i32 = arith.constant 0 : i32
    %c0_i32_0 = arith.constant 0 : i32
    %c0_i32_1 = arith.constant 0 : i32
    return %c0_i32, %c0_i32_0 : i32, i32
  }
  func.func @transform_2(%arg0: i32) -> (i32, i32, i32) {
    %c0_i32 = arith.constant 0 : i32
    %c0_i32_0 = arith.constant 0 : i32
    %c0_i32_1 = arith.constant 0 : i32
    return %arg0, %c0_i32, %c0_i32_0 : i32, i32, i32
  }
  func.func @transform_3(%arg0: i32) -> (i32, i32, i32) {
    %c0_i32 = arith.constant 0 : i32
    %c0_i32_0 = arith.constant 0 : i32
    %c0_i32_1 = arith.constant 0 : i32
    return %arg0, %c0_i32, %c0_i32_0 : i32, i32, i32
  }
  func.func @transform_4(%arg0: i32) -> (i32, i32, i32) {
    %c0_i32 = arith.constant 0 : i32
    %c0_i32_0 = arith.constant 0 : i32
    %c0_i32_1 = arith.constant 0 : i32
    return %arg0, %c0_i32, %c0_i32_0 : i32, i32, i32
  }
}

</mosaic_0001>

<llo_original>
// kernel: tpu_custom_call.1
$region0: #{tpu_custom_call.1}
  #allocation0 [shape = 'u32[]', space=smem, size = 0x4, offset = 0x4, fixed_abs, tag = 'smem constant byte address 0x4 - core index']
  #allocation1 [shape = 'u32[144,128]{1,0:T(1,128)}', space=vmem, size = 0x12000, scoped, tag = 'internal scratch']
  %s0 = inlined_call_operand.vmem [shape: f32[2], index: 0, kind: input, shape index: {}]
  %s1 = inlined_call_operand.vmem [shape: bf16[8,8], index: 1, kind: input, shape index: {}]
  %s2 = inlined_call_operand.vmem [shape: f32[4,8,1], index: 2, kind: input, shape index: {}]
  %s3 = inlined_call_operand.vmem [shape: f32[4,8,128], index: 3, kind: input, shape index: {}]
  %s4 = inlined_call_operand.vmem [shape: f32[4,124,128], index: 4, kind: output, shape index: {}]
  %s5 = sld [smem:[#allocation0]]
  $region53: #{tpu_custom_call.1} parent=0
    _
  %s7 = ssub.s32 1, %s5
  %s8 = scalar_select 0, %s7, %s5
  $region1: #{tpu_custom_call.1} parent=0
    #allocation2 [shape = 'u8[512]{0}', space=smem, size = 0x200, scoped, tag = 'input window, operand 0, single buffered']
    #allocation3 [shape = 's32[2]{0}', space=sflag, size = 0x8, scoped, tag = 'scoped memory for tpu_custom_call.1']
    %9 = vsyncpa [#allocation3], 0
    loop: start=0, step=1, limit=4
    $region2: #{tpu_custom_call.1} parent=1 // loop_pre_header
      _
    $region3: #{tpu_custom_call.1} parent=1 // loop_header
      %s11 = sphi 0, %s15
      %p12 = scmp.ge.s32.totalorder %s11, 4
      %s19 = sphi 0, %s19
      %s21 = sphi 0, %s19
      %s22 = sphi 0, %s21
      %s36 = sphi 0, %s22
      %s40 = sphi 0, %s40
      %s42 = sphi 0, %s40
      %s43 = sphi 0, %s42
      %s57 = sphi 0, %s43
      %s63 = sphi 0, %s65
      %s66 = sphi 0, %s63
      %s67 = sphi 0, %s66
      %s83 = sphi 0, %s67
      %s89 = sphi 0, %s91
      %s92 = sphi 0, %s89
      %s93 = sphi 0, %s92
      %s109 = sphi 0, %s93
      %s115 = sphi 0, %s117
      %s118 = sphi 0, %s115
      %s119 = sphi 0, %s118
      %s135 = sphi 0, %s119
    $region4: #{tpu_custom_call.1} parent=1 // loop_header_branch
      %14 = sbr.rel (%p12) target = $region8
    $region5: #{tpu_custom_call.1} parent=1 // loop_body
      %s16 = ssub.s32 %s11, 1
      %s17 = ssub.s32 %s11, 2
      %s18 = sadd.s32 %s11, 1
      %s20 = sadd.s32 %s19, 1
      %p23 = scmp.eq.s32.totalorder %s11, 1
      %p24 = scmp.ne.s32.totalorder %s19, %s21
      %p25 = scmp.eq.s32.totalorder %s11, 0
      %p26 = por %p24, %p25
      %p27 = scmp.ne.s32.totalorder %s19, %s21
      %p28 = scmp.eq.s32.totalorder %s16, 1
      %p29 = por %p27, %p28
      %p30 = scmp.ne.s32.totalorder %s21, %s22
      %p31 = scmp.eq.s32.totalorder %s16, 0
      %p32 = por %p30, %p31
      %p33 = scmp.ne.s32.totalorder %s21, %s22
      %p34 = scmp.eq.s32.totalorder %s17, 1
      %p35 = por %p33, %p34
      %p37 = scmp.ne.s32.totalorder %s22, %s36
      %p38 = scmp.eq.s32.totalorder %s17, 0
      %p39 = por %p37, %p38
      %s41 = sadd.s32 %s40, 1
      %p44 = scmp.eq.s32.totalorder %s11, 1
      %p45 = scmp.ne.s32.totalorder %s40, %s42
      %p46 = scmp.eq.s32.totalorder %s11, 0
      %p47 = por %p45, %p46
      %p48 = scmp.ne.s32.totalorder %s40, %s42
      %p49 = scmp.eq.s32.totalorder %s16, 1
      %p50 = por %p48, %p49
      %p51 = scmp.ne.s32.totalorder %s42, %s43
      %p52 = scmp.eq.s32.totalorder %s16, 0
      %p53 = por %p51, %p52
      %p54 = scmp.ne.s32.totalorder %s42, %s43
      %p55 = scmp.eq.s32.totalorder %s17, 1
      %p56 = por %p54, %p55
      %p58 = scmp.ne.s32.totalorder %s43, %s57
      %p59 = scmp.eq.s32.totalorder %s17, 0
      %p60 = por %p58, %p59
      %s61 = ssub.s32 %s11, %s18
      %p62 = scmp.eq.s32.totalorder %s61, 0
      %s64 = sadd.s32 %s63, 1
      %s65 = scalar_select %p62, %s63, %s64
      %p68 = pneg %p62
      %p69 = scmp.eq.s32.totalorder %s11, 1
      %p70 = por %p68, %p69
      %p71 = scmp.ne.s32.totalorder %s63, %s66
      %p72 = scmp.eq.s32.totalorder %s11, 0
      %p73 = por %p71, %p72
      %p74 = scmp.ne.s32.totalorder %s63, %s66
      %p75 = scmp.eq.s32.totalorder %s16, 1
      %p76 = por %p74, %p75
      %p77 = scmp.ne.s32.totalorder %s66, %s67
      %p78 = scmp.eq.s32.totalorder %s16, 0
      %p79 = por %p77, %p78
      %p80 = scmp.ne.s32.totalorder %s66, %s67
      %p81 = scmp.eq.s32.totalorder %s17, 1
      %p82 = por %p80, %p81
      %p84 = scmp.ne.s32.totalorder %s67, %s83
      %p85 = scmp.eq.s32.totalorder %s17, 0
      %p86 = por %p84, %p85
      %s87 = ssub.s32 %s11, %s18
      %p88 = scmp.eq.s32.totalorder %s87, 0
      %s90 = sadd.s32 %s89, 1
      %s91 = scalar_select %p88, %s89, %s90
      %p94 = pneg %p88
      %p95 = scmp.eq.s32.totalorder %s11, 1
      %p96 = por %p94, %p95
      %p97 = scmp.ne.s32.totalorder %s89, %s92
      %p98 = scmp.eq.s32.totalorder %s11, 0
      %p99 = por %p97, %p98
      %p100 = scmp.ne.s32.totalorder %s89, %s92
      %p101 = scmp.eq.s32.totalorder %s16, 1
      %p102 = por %p100, %p101
      %p103 = scmp.ne.s32.totalorder %s92, %s93
      %p104 = scmp.eq.s32.totalorder %s16, 0
      %p105 = por %p103, %p104
      %p106 = scmp.ne.s32.totalorder %s92, %s93
      %p107 = scmp.eq.s32.totalorder %s17, 1
      %p108 = por %p106, %p107
      %p110 = scmp.ne.s32.totalorder %s93, %s109
      %p111 = scmp.eq.s32.totalorder %s17, 0
      %p112 = por %p110, %p111
      %s113 = ssub.s32 %s11, %s18
      %p114 = scmp.eq.s32.totalorder %s113, 0
      %s116 = sadd.s32 %s115, 1
      %s117 = scalar_select %p114, %s115, %s116
      %p120 = pneg %p114
      %p121 = scmp.eq.s32.totalorder %s11, 1
      %p122 = por %p120, %p121
      %p123 = scmp.ne.s32.totalorder %s115, %s118
      %p124 = scmp.eq.s32.totalorder %s11, 0
      %p125 = por %p123, %p124
      %p126 = scmp.ne.s32.totalorder %s115, %s118
      %p127 = scmp.eq.s32.totalorder %s16, 1
      %p128 = por %p126, %p127
      %p129 = scmp.ne.s32.totalorder %s118, %s119
      %p130 = scmp.eq.s32.totalorder %s16, 0
      %p131 = por %p129, %p130
      %p132 = scmp.ne.s32.totalorder %s118, %s119
      %p133 = scmp.eq.s32.totalorder %s17, 1
      %p134 = por %p132, %p133
      %p136 = scmp.ne.s32.totalorder %s119, %s135
      %p137 = scmp.eq.s32.totalorder %s17, 0
      %p138 = por %p136, %p137
      %p139 = scmp.le.s32.totalorder 1, %s11
      %p140 = scmp.lt.s32.totalorder %s11, 3
      %p141 = pnand %p139, %p140
      %p142 = pneg %p141
      // Predicated region
      $region9: #{tpu_custom_call.1} parent=5 // pred_check
        _
      $region10: #{tpu_custom_call.1} parent=5 // pred_check_branch
        %144 = sbr.rel (%p141) target = $region12
      $region11: #{tpu_custom_call.1} parent=5 // pred_region
        %s145 = ssub.s32 %s11, 1
        // Predicated region
        $region13: #{tpu_custom_call.1} parent=11 // pred_check
          %p146 = pneg %p32
        $region14: #{tpu_custom_call.1} parent=11 // pred_check_branch
          %148 = sbr.rel (%p146) target = $region16
        $region15: #{tpu_custom_call.1} parent=11 // pred_region
          %s150 = ssub.s32 16, 16
          %151 = vsyncadd [#allocation3], %s150
          %s153 = sshll.u32 %s0, 4
          %s154 = int_to_ptr.vmem [resolvable:$true] %s153
          %156 = dma.vmem_to_smem %s154, 16, [#allocation2], [#allocation3]
        $region16: #{tpu_custom_call.1} parent=11 // pred_fallthru
          _
        // Predicated region
        $region17: #{tpu_custom_call.1} parent=11 // pred_check
          %p157 = pneg %p53
        $region18: #{tpu_custom_call.1} parent=11 // pred_check_branch
          %159 = sbr.rel (%p157) target = $region20
        $region19: #{tpu_custom_call.1} parent=11 // pred_region
          _
        $region20: #{tpu_custom_call.1} parent=11 // pred_fallthru
          _
      $region12: #{tpu_custom_call.1} parent=5 // pred_fallthru
        _
      %p160 = scmp.lt.s32.totalorder %s11, 2
      // Predicated region
      $region21: #{tpu_custom_call.1} parent=5 // pred_check
        %p161 = pneg %p160
      $region22: #{tpu_custom_call.1} parent=5 // pred_check_branch
        %163 = sbr.rel (%p161) target = $region24
      $region23: #{tpu_custom_call.1} parent=5 // pred_region
        // Predicated region
        $region25: #{tpu_custom_call.1} parent=23 // pred_check
          %p164 = pneg %p73
        $region26: #{tpu_custom_call.1} parent=23 // pred_check_branch
          %166 = sbr.rel (%p164) target = $region28
        $region27: #{tpu_custom_call.1} parent=23 // pred_region
          %s167 = smul.u32 2, %s11
          %p168 = scmp.lt.s32.totalorder %s167, 3
          %s169 = scalar_select %p168, %s167, 3
          %s170 = smul.addr %s169, 8
          %s171 = scalar_lea.vmem %s2, %s170
          %s172 = smul.u32 2, %s11
        $region28: #{tpu_custom_call.1} parent=23 // pred_fallthru
          _
        // Predicated region
        $region29: #{tpu_custom_call.1} parent=23 // pred_check
          %p173 = pneg %p99
        $region30: #{tpu_custom_call.1} parent=23 // pred_check_branch
          %175 = sbr.rel (%p173) target = $region32
        $region31: #{tpu_custom_call.1} parent=23 // pred_region
          %s176 = smul.u32 2, %s11
          %p177 = scmp.lt.s32.totalorder %s176, 3
          %s178 = scalar_select %p177, %s176, 3
          %s179 = smul.addr %s178, 8
          %s180 = scalar_lea.vmem %s3, %s179
          %s181 = smul.u32 2, %s11
        $region32: #{tpu_custom_call.1} parent=23 // pred_fallthru
          _
      $region24: #{tpu_custom_call.1} parent=5 // pred_fallthru
        _
      %p182 = scmp.le.s32.totalorder 1, %s11
      %p183 = scmp.lt.s32.totalorder %s11, 3
      %p184 = pnand %p182, %p183
      %p185 = pneg %p184
      // Predicated region
      $region33: #{tpu_custom_call.1} parent=5 // pred_check
        _
      $region34: #{tpu_custom_call.1} parent=5 // pred_check_branch
        %187 = sbr.rel (%p184) target = $region36
      $region35: #{tpu_custom_call.1} parent=5 // pred_region
        %s188 = ssub.s32 %s11, 1
        // Predicated region
        $region37: #{tpu_custom_call.1} parent=35 // pred_check
          %p189 = pneg %p32
        $region38: #{tpu_custom_call.1} parent=35 // pred_check_branch
          %191 = sbr.rel (%p189) target = $region40
        $region39: #{tpu_custom_call.1} parent=35 // pred_region
          %192 = dma.done [#allocation3], 16
        $region40: #{tpu_custom_call.1} parent=35 // pred_fallthru
          _
        %193 = sfence
        %p194 = pneg %p32
        %p195 = pneg %p29
        %p196 = pneg %p53
        %p197 = pneg %p50
        %s198 = smul.u32 2, %s16
        %p199 = scmp.lt.s32.totalorder %s198, 3
        %s200 = scalar_select %p199, %s198, 3
        %s201 = smul.addr %s200, 8
        %s202 = scalar_lea.vmem %s2, %s201
        %p203 = pneg %p79
        %p204 = pneg %p76
        %s205 = smul.u32 2, %s16
        %p206 = scmp.lt.s32.totalorder %s205, 3
        %s207 = scalar_select %p206, %s205, 3
        %s208 = smul.addr %s207, 8
        %s209 = scalar_lea.vmem %s3, %s208
        %p210 = pneg %p105
        %p211 = pneg %p102
        %p212 = pneg %p131
        %p213 = pneg %p128
        %s214 = smul.u32 2, %s16
        %p215 = scmp.lt.s32.totalorder %s214, 3
        %s216 = scalar_select %p215, %s214, 3
        %s217 = smul.addr %s216, 16
        %s218 = smul.addr %s217, 8
        %s219 = scalar_lea.vmem %s4, %s218
        %s220 = smul.u32 2, %s16
        %p221 = scmp.lt.s32.totalorder %s220, 3
        %s222 = scalar_select %p221, %s220, 3
        %s223 = smul.addr %s222, 8
        %s224 = scalar_lea.vmem %s2, %s223
        %s225 = smul.u32 2, %s16
        %s226 = smul.u32 2, %s16
        %p227 = scmp.lt.s32.totalorder %s226, 3
        %s228 = scalar_select %p227, %s226, 3
        %s229 = smul.addr %s228, 8
        %s230 = scalar_lea.vmem %s3, %s229
        %s231 = smul.u32 2, %s16
        %s232 = smul.u32 2, %s16
        %p233 = scmp.lt.s32.totalorder %s232, 3
        %s234 = scalar_select %p233, %s232, 3
        %s235 = smul.addr %s234, 16
        %s236 = smul.addr %s235, 8
        %s237 = scalar_lea.vmem %s4, %s236
        %s238 = smul.u32 2, %s16
        %s240 = sld [smem:[#allocation2]]
        %s241 = sld [smem:[#allocation2 + $0x1]]
        %v242 = vld [vmem:[%s1] sm:$0xf]
        %v243 = vld [vmem:[%s230] sm:$0xff]
        %v244 = vld [vmem:[%s224] sm:$0xff]
        %v245 = vlaneseq
        %v246 = vshrl.u32 %v245, 7
        %v247 = vsub.s32 0, %v246
        %v248 = vrot.slane %v244, %v247
        %v249 = vsub.f32 %v244, %v248
        %s250 = ssub.f32 0.0, %s241
        %v251 = vstv %s250
        %v252 = vmul.f32 %v251, %v249
        %v253 = vmul.f32 %v252, 1.442695
        %v254 = vpow.pop %v253
        %v255 = vstv %s241
        %v256 = vmul.f32 %v255, %v249
        %v257 = vmul.f32 %v256, 1.442695
        %v258 = vpow.pop %v257
        %v259 = vstv %s240
        %v260 = vmul.f32 %v259, %v258
        %v261 = vmax.f32 %v243, 0.0
        %v262 = vpack.c.bf16 %v243, %v243
        %264 = vset.pattern.permute.xlu0 0
        %265 = vperm.xlu0 %264, %v254
        %v266 = vpop.permute.xlu0 %265
        %v268 = vmul.f32 %v261, %v266
        %v269 = vpack.c.bf16 %v268, %v268
        %vm270 = vcmask 64512
        %v272 = vsel %vm270, %v242, 0
        %vm274 = vcmask 1043456
        %v276 = vsel %vm274, %v262, 0
        %v279 = vsel %vm274, %v269, 0
        %281 = vmatprep.subr.bf16.mxu0 %v279
        %282 = vmatpush1.bf16.msra.mxu0 %v276
        %283 = vmatprep.subr.bf16.mxu0 0
        %284 = vmatpush1.bf16.msra.mxu0 0
        %285 = vmatprep.subr.bf16.mxu0 0
        %286 = vmatpush1.bf16.msra.mxu0 0
        %287 = vmatprep.subr.bf16.mxu0 0
        %288 = vmatpush1.bf16.msra.mxu0 0
        %289 = vmatprep.subr.bf16.mxu0 0
        %290 = vmatpush1.bf16.msra.mxu0 0
        %291 = vmatprep.subr.bf16.mxu0 0
        %292 = vmatpush1.bf16.msra.mxu0 0
        %293 = vmatprep.subr.bf16.mxu0 0
        %294 = vmatpush1.bf16.msra.mxu0 0
        %295 = vmatprep.subr.bf16.mxu0 0
        %296 = vmatpush1.bf16.msra.mxu0 0
        %297 = vmatprep.subr.bf16.mxu0 0
        %298 = vmatpush1.bf16.msra.mxu0 0
        %299 = vmatprep.subr.bf16.mxu0 0
        %300 = vmatpush1.bf16.msra.mxu0 0
        %301 = vmatprep.subr.bf16.mxu0 0
        %302 = vmatpush1.bf16.msra.mxu0 0
        %303 = vmatprep.subr.bf16.mxu0 0
        %304 = vmatpush1.bf16.msra.mxu0 0
        %305 = vmatprep.subr.bf16.mxu0 0
        %306 = vmatpush1.bf16.msra.mxu0 0
        %307 = vmatprep.subr.bf16.mxu0 0
        %308 = vmatpush1.bf16.msra.mxu0 0
        %309 = vmatprep.subr.bf16.mxu0 0
        %310 = vmatpush1.bf16.msra.mxu0 0
        %311 = vmatprep.subr.bf16.mxu0 0
        %312 = vmatpush1.bf16.msra.mxu0 0
        %313 = vmatprep.mubr.bf16.mxu0 0
        %314 = vmatmul.mubr.bf16.gmra.mrb[0].mxu0 %v272
        %v315 = vpop.f32.mrb[0].mxu0
        %v316 = vadd.f32 0.0, %v315
        %v317 = vpop.f32.mrb[0].mxu0
        %v318 = vadd.f32 0.0, %v317
        %v319 = vpop.f32.mrb[0].mxu0
        %v320 = vpop.f32.mrb[0].mxu0
        %321 = vdwg.mxu0
        %323 = vset.pattern.permute.xlu0 0
        %324 = vperm.xlu0 %323, %v260
        %v325 = vpop.permute.xlu0 %324
        %v327 = vmul.f32 %v325, %v318
        %v328 = vadd.f32 %v316, %v327
        %329 = vst [vmem:[%s237] sm:$0xff] %v328
        %330 = vst [vmem:[%s237 + $0x8] sm:$0xff] -123.0
        %331 = vst [vmem:[%s237 + $0x10] sm:$0xff] -123.0
        %332 = vst [vmem:[%s237 + $0x18] sm:$0xff] -123.0
        %333 = vst [vmem:[%s237 + $0x20] sm:$0xff] -123.0
        %334 = vst [vmem:[%s237 + $0x28] sm:$0xff] -123.0
        %335 = vst [vmem:[%s237 + $0x30] sm:$0xff] -123.0
        %336 = vst [vmem:[%s237 + $0x38] sm:$0xff] -123.0
        %337 = vst [vmem:[%s237 + $0x40] sm:$0xff] -123.0
        %338 = vst [vmem:[%s237 + $0x48] sm:$0xff] -123.0
        %339 = vst [vmem:[%s237 + $0x50] sm:$0xff] -123.0
        %340 = vst [vmem:[%s237 + $0x58] sm:$0xff] -123.0
        %341 = vst [vmem:[%s237 + $0x60] sm:$0xff] -123.0
        %342 = vst [vmem:[%s237 + $0x68] sm:$0xff] -123.0
        %343 = vst [vmem:[%s237 + $0x70] sm:$0xff] -123.0
        %344 = vst [vmem:[%s237 + $0x78] sm:$0xf] -123.0
        %s345 = scalar_lea.vmem %s230, 8
        %v346 = vld [vmem:[%s345] sm:$0xff]
        %s347 = scalar_lea.vmem %s224, 8
        %v348 = vld [vmem:[%s347] sm:$0xff]
        %v349 = vlaneseq
        %v350 = vshrl.u32 %v349, 7
        %v351 = vsub.s32 0, %v350
        %v352 = vrot.slane %v348, %v351
        %v353 = vsub.f32 %v348, %v352
        %v354 = vmul.f32 %v251, %v353
        %v355 = vmul.f32 %v354, 1.442695
        %v356 = vpow.pop %v355
        %v357 = vmul.f32 %v255, %v353
        %v358 = vmul.f32 %v357, 1.442695
        %v359 = vpow.pop %v358
        %v360 = vmul.f32 %v259, %v359
        %v361 = vmax.f32 %v346, 0.0
        %v362 = vpack.c.bf16 %v346, %v346
        %364 = vset.pattern.permute.xlu0 0
        %365 = vperm.xlu0 %364, %v356
        %v366 = vpop.permute.xlu0 %365
        %v368 = vmul.f32 %v361, %v366
        %v369 = vpack.c.bf16 %v368, %v368
        %v371 = vsel %vm274, %v362, 0
        %v374 = vsel %vm274, %v369, 0
        %376 = vmatprep.subr.bf16.mxu0 %v374
        %377 = vmatpush1.bf16.msra.mxu0 %v371
        %378 = vmatprep.subr.bf16.mxu0 0
        %379 = vmatpush1.bf16.msra.mxu0 0
        %380 = vmatprep.subr.bf16.mxu0 0
        %381 = vmatpush1.bf16.msra.mxu0 0
        %382 = vmatprep.subr.bf16.mxu0 0
        %383 = vmatpush1.bf16.msra.mxu0 0
        %384 = vmatprep.subr.bf16.mxu0 0
        %385 = vmatpush1.bf16.msra.mxu0 0
        %386 = vmatprep.subr.bf16.mxu0 0
        %387 = vmatpush1.bf16.msra.mxu0 0
        %388 = vmatprep.subr.bf16.mxu0 0
        %389 = vmatpush1.bf16.msra.mxu0 0
        %390 = vmatprep.subr.bf16.mxu0 0
        %391 = vmatpush1.bf16.msra.mxu0 0
        %392 = vmatprep.subr.bf16.mxu0 0
        %393 = vmatpush1.bf16.msra.mxu0 0
        %394 = vmatprep.subr.bf16.mxu0 0
        %395 = vmatpush1.bf16.msra.mxu0 0
        %396 = vmatprep.subr.bf16.mxu0 0
        %397 = vmatpush1.bf16.msra.mxu0 0
        %398 = vmatprep.subr.bf16.mxu0 0
        %399 = vmatpush1.bf16.msra.mxu0 0
        %400 = vmatprep.subr.bf16.mxu0 0
        %401 = vmatpush1.bf16.msra.mxu0 0
        %402 = vmatprep.subr.bf16.mxu0 0
        %403 = vmatpush1.bf16.msra.mxu0 0
        %404 = vmatprep.subr.bf16.mxu0 0
        %405 = vmatpush1.bf16.msra.mxu0 0
        %406 = vmatprep.subr.bf16.mxu0 0
        %407 = vmatpush1.bf16.msra.mxu0 0
        %408 = vmatprep.mubr.bf16.mxu0 0
        %409 = vmatmul.mubr.bf16.gmra.mrb[0].mxu0 %v272
        %v410 = vpop.f32.mrb[0].mxu0
        %v411 = vadd.f32 0.0, %v410
        %v412 = vpop.f32.mrb[0].mxu0
        %v413 = vadd.f32 0.0, %v412
        %v414 = vpop.f32.mrb[0].mxu0
        %v415 = vpop.f32.mrb[0].mxu0
        %416 = vdwg.mxu0
        %418 = vset.pattern.permute.xlu0 0
        %419 = vperm.xlu0 %418, %v360
        %v420 = vpop.permute.xlu0 %419
        %v422 = vmul.f32 %v420, %v413
        %v423 = vadd.f32 %v411, %v422
        %s424 = scalar_lea.vmem %s237, 128
        %425 = vst [vmem:[%s424] sm:$0xff] %v423
        %426 = vst [vmem:[%s424 + $0x8] sm:$0xff] -123.0
        %427 = vst [vmem:[%s424 + $0x10] sm:$0xff] -123.0
        %428 = vst [vmem:[%s424 + $0x18] sm:$0xff] -123.0
        %429 = vst [vmem:[%s424 + $0x20] sm:$0xff] -123.0
        %430 = vst [vmem:[%s424 + $0x28] sm:$0xff] -123.0
        %431 = vst [vmem:[%s424 + $0x30] sm:$0xff] -123.0
        %432 = vst [vmem:[%s424 + $0x38] sm:$0xff] -123.0
        %433 = vst [vmem:[%s424 + $0x40] sm:$0xff] -123.0
        %434 = vst [vmem:[%s424 + $0x48] sm:$0xff] -123.0
        %435 = vst [vmem:[%s424 + $0x50] sm:$0xff] -123.0
        %436 = vst [vmem:[%s424 + $0x58] sm:$0xff] -123.0
        %437 = vst [vmem:[%s424 + $0x60] sm:$0xff] -123.0
        %438 = vst [vmem:[%s424 + $0x68] sm:$0xff] -123.0
        %439 = vst [vmem:[%s424 + $0x70] sm:$0xff] -123.0
        %440 = vst [vmem:[%s424 + $0x78] sm:$0xf] -123.0
        %s441 = smul.u32 2, %s16
        %p442 = scmp.lt.s32.totalorder %s441, 3
        %s443 = scalar_select %p442, %s441, 3
        %s444 = smul.addr %s443, 16
        %s445 = smul.addr %s444, 8
        %s446 = scalar_lea.vmem %s4, %s445
        // Predicated region
        $region41: #{tpu_custom_call.1} parent=35 // pred_check
          %p447 = pneg %p128
        $region42: #{tpu_custom_call.1} parent=35 // pred_check_branch
          %449 = sbr.rel (%p447) target = $region44
        $region43: #{tpu_custom_call.1} parent=35 // pred_region
          %s450 = smul.u32 2, %s16
        $region44: #{tpu_custom_call.1} parent=35 // pred_fallthru
          _
      $region36: #{tpu_custom_call.1} parent=5 // pred_fallthru
        _
      %p451 = scmp.le.s32.totalorder 2, %s11
      // Predicated region
      $region45: #{tpu_custom_call.1} parent=5 // pred_check
        %p452 = pneg %p451
      $region46: #{tpu_custom_call.1} parent=5 // pred_check_branch
        %454 = sbr.rel (%p452) target = $region48
      $region47: #{tpu_custom_call.1} parent=5 // pred_region
        %s455 = ssub.s32 %s11, 2
        // Predicated region
        $region49: #{tpu_custom_call.1} parent=47 // pred_check
          %p456 = pneg %p134
        $region50: #{tpu_custom_call.1} parent=47 // pred_check_branch
          %458 = sbr.rel (%p456) target = $region52
        $region51: #{tpu_custom_call.1} parent=47 // pred_region
          %s459 = smul.u32 2, %s17
          %p460 = scmp.lt.s32.totalorder %s459, 3
          %s461 = scalar_select %p460, %s459, 3
          %s462 = smul.addr %s461, 16
          %s463 = smul.addr %s462, 8
          %s464 = scalar_lea.vmem %s4, %s463
        $region52: #{tpu_custom_call.1} parent=47 // pred_fallthru
          _
      $region48: #{tpu_custom_call.1} parent=5 // pred_fallthru
        _
    $region6: #{tpu_custom_call.1} parent=1 // loop_footer
      %s15 = sadd.s32 1, %s11
    $region7: #{tpu_custom_call.1} parent=1 // loop_footer_branch
      %10 = sbr.rel target = $region3
    $region8: #{tpu_custom_call.1} parent=1 // loop_exit
      _
    %465 = vsyncpa [#allocation3], 1
    %s466 = scalar_lea.sflag [#allocation3], 1
    %467 = vsyncpa %s466, 1

</llo_original>
